<compile_context>
chip_gen: v7x
topology: tpu7x:2x2x1
jax: 0.10.0
libtpu: 0.0.40
codegen_flags: <defaults>
</compile_context>

<pallas_src>
import math
import numpy as np
import jax
import jax.numpy as jnp
from jax.experimental import pallas as pl
from jax.experimental.pallas import tpu as pltpu


def _round_up(x, m):
    return ((x + m - 1) // m) * m


def _make_kernel(num_frequencies, freq_scale, d_in, n_freq):
    # Frequencies as compile-time Python floats (scalar immediates — nothing
    # non-scalar is captured by the kernel closure).
    freq_consts = [
        [float((2.0 ** i) * float(freq_scale) * math.pi) for i in range(n)]
        for n in num_frequencies
    ]

    def kernel(ct_ref, out_ref):
        ct = ct_ref[...]                               # (d_in, TILE_B) f32, lane-dense
        rows = []
        for j in range(d_in):
            cj = ct[j:j + 1, :]                        # (1, TILE_B)
            for f in freq_consts[j]:
                rows.append(f * cj)                    # scalar * row on VPU
        prod = jnp.concatenate(rows, axis=0)           # (n_freq, TILE_B), lane-dense
        # Single dense sin / cos over all frequencies, one full-block store.
        out_ref[...] = jnp.concatenate(
            [ct, jnp.sin(prod), jnp.cos(prod)], axis=0)

    return kernel


def make_pos_encoding_nerf_optimized(num_frequencies, freq_scale=1.0):
    """Returns (apply_fn, out_dim). apply_fn(coords[B, D]) -> [B, out_dim]."""
    num_frequencies = tuple(int(n) for n in num_frequencies)
    d_in = len(num_frequencies)
    n_freq = int(np.sum(num_frequencies))
    out_dim = d_in + 2 * n_freq
    kernel = _make_kernel(num_frequencies, freq_scale, d_in, n_freq)

    def apply(coords, tile_b=16384):
        coords = coords.reshape(coords.shape[0], d_in).astype(jnp.float32)
        b = coords.shape[0]

        # Lane-dense batch tile: multiple of 128, at most ~tile_b columns.
        tile = min(_round_up(int(tile_b), 128), _round_up(b, 128))
        grid = pl.cdiv(b, tile)
        b_pad = grid * tile

        ct = coords.T                                   # (d_in, b) — tiny transpose
        if b_pad != b:
            ct = jnp.pad(ct, ((0, 0), (0, b_pad - b)))  # pad cols (sliced off below)

        # f32, double-buffered input + output blocks (+ slack); capped well
        # under the v7x 64 MiB physical VMEM.
        buffered = 2 * 4 * (d_in + out_dim) * tile
        vmem_limit = int(min(max(buffered * 3 // 2 + (1 << 20), 32 << 20), 48 << 20))

        out_t = pl.pallas_call(
            kernel,
            out_shape=jax.ShapeDtypeStruct((out_dim, b_pad), jnp.float32),
            grid=(grid,),
            in_specs=[pl.BlockSpec((d_in, tile), lambda i: (0, i))],
            out_specs=pl.BlockSpec((out_dim, tile), lambda i: (0, i)),
            compiler_params=pltpu.CompilerParams(
                dimension_semantics=("parallel",),
                vmem_limit_bytes=vmem_limit),
        )(ct)

        return out_t[:, :b].T                           # back to (B, out_dim)

    return apply, out_dim


def _reference(coords, num_frequencies, freq_scale):
    # Pure-JAX mirror of the PyTorch forward, for correctness checking.
    freqs = jnp.concatenate(
        [2.0 ** jnp.arange(n, dtype=jnp.float32) * freq_scale * math.pi
         for n in num_frequencies])
    coords_ = jnp.concatenate(
        [jnp.tile(coords[..., j:j + 1], (1, n))
         for j, n in enumerate(num_frequencies)], axis=-1)
    prod = freqs[None, :] * coords_
    return jnp.concatenate([coords, jnp.sin(prod), jnp.cos(prod)], axis=-1)


if __name__ == "__main__":
    num_frequencies = (4, 4, 4, 4)   # one tuple entry per input coordinate
    freq_scale = 1.0
    d_in = len(num_frequencies)

    apply_fn, out_dim = make_pos_encoding_nerf_optimized(
        num_frequencies, freq_scale)

    key = jax.random.PRNGKey(0)
    for batch in (256, 200):         # 200 exercises the padded-tail path
        k = jax.random.fold_in(key, batch)
        coords = jax.random.uniform(k, (batch, d_in), dtype=jnp.float32,
                                    minval=-1.0, maxval=1.0)
        out = jax.block_until_ready(apply_fn(coords))
        ref = _reference(coords, num_frequencies, freq_scale)
        assert out.shape == (batch, out_dim)
        np.testing.assert_allclose(np.asarray(out), np.asarray(ref),
                                   rtol=1e-5, atol=1e-5)
    print("KERNEL_OK")
</pallas_src>

<mosaic_0001>
module attributes {stable_mosaic.version = 11 : i64} {
  func.func @kernel(%arg0: i32, %arg1: memref<4x256xf32, #tpu.memory_space<vmem>>, %arg2: memref<36x256xf32, #tpu.memory_space<vmem>>) attributes {dimension_semantics = [#tpu.dimension_semantics<parallel>], iteration_bounds = array<i64: 1>, scalar_prefetch = 0 : i64, scratch_operands = 0 : i64, tpu.core_type = #tpu.core_type<tc>, window_params = [{transform_indices = @transform_0, window_bounds = array<i64: 4, 256>}, {transform_indices = @transform_1, window_bounds = array<i64: 36, 256>}]} {
    %c0 = arith.constant 0 : index
    %c0_0 = arith.constant 0 : index
    %0 = vector.load %arg1[%c0, %c0_0] : memref<4x256xf32, #tpu.memory_space<vmem>>, vector<4x256xf32>
    %1 = vector.extract_strided_slice %0 {offsets = [0, 0], sizes = [1, 256], strides = [1, 1]} : vector<4x256xf32> to vector<1x256xf32>
    %cst = arith.constant 3.14159274 : f32
    %2 = vector.broadcast %cst : f32 to vector<1x256xf32>
    %3 = arith.mulf %2, %1 : vector<1x256xf32>
    %cst_1 = arith.constant 6.28318548 : f32
    %4 = vector.broadcast %cst_1 : f32 to vector<1x256xf32>
    %5 = arith.mulf %4, %1 : vector<1x256xf32>
    %cst_2 = arith.constant 12.566371 : f32
    %6 = vector.broadcast %cst_2 : f32 to vector<1x256xf32>
    %7 = arith.mulf %6, %1 : vector<1x256xf32>
    %cst_3 = arith.constant 25.1327419 : f32
    %8 = vector.broadcast %cst_3 : f32 to vector<1x256xf32>
    %9 = arith.mulf %8, %1 : vector<1x256xf32>
    %10 = vector.extract_strided_slice %0 {offsets = [1, 0], sizes = [1, 256], strides = [1, 1]} : vector<4x256xf32> to vector<1x256xf32>
    %cst_4 = arith.constant 3.14159274 : f32
    %11 = vector.broadcast %cst_4 : f32 to vector<1x256xf32>
    %12 = arith.mulf %11, %10 : vector<1x256xf32>
    %cst_5 = arith.constant 6.28318548 : f32
    %13 = vector.broadcast %cst_5 : f32 to vector<1x256xf32>
    %14 = arith.mulf %13, %10 : vector<1x256xf32>
    %cst_6 = arith.constant 12.566371 : f32
    %15 = vector.broadcast %cst_6 : f32 to vector<1x256xf32>
    %16 = arith.mulf %15, %10 : vector<1x256xf32>
    %cst_7 = arith.constant 25.1327419 : f32
    %17 = vector.broadcast %cst_7 : f32 to vector<1x256xf32>
    %18 = arith.mulf %17, %10 : vector<1x256xf32>
    %19 = vector.extract_strided_slice %0 {offsets = [2, 0], sizes = [1, 256], strides = [1, 1]} : vector<4x256xf32> to vector<1x256xf32>
    %cst_8 = arith.constant 3.14159274 : f32
    %20 = vector.broadcast %cst_8 : f32 to vector<1x256xf32>
    %21 = arith.mulf %20, %19 : vector<1x256xf32>
    %cst_9 = arith.constant 6.28318548 : f32
    %22 = vector.broadcast %cst_9 : f32 to vector<1x256xf32>
    %23 = arith.mulf %22, %19 : vector<1x256xf32>
    %cst_10 = arith.constant 12.566371 : f32
    %24 = vector.broadcast %cst_10 : f32 to vector<1x256xf32>
    %25 = arith.mulf %24, %19 : vector<1x256xf32>
    %cst_11 = arith.constant 25.1327419 : f32
    %26 = vector.broadcast %cst_11 : f32 to vector<1x256xf32>
    %27 = arith.mulf %26, %19 : vector<1x256xf32>
    %28 = vector.extract_strided_slice %0 {offsets = [3, 0], sizes = [1, 256], strides = [1, 1]} : vector<4x256xf32> to vector<1x256xf32>
    %cst_12 = arith.constant 3.14159274 : f32
    %29 = vector.broadcast %cst_12 : f32 to vector<1x256xf32>
    %30 = arith.mulf %29, %28 : vector<1x256xf32>
    %cst_13 = arith.constant 6.28318548 : f32
    %31 = vector.broadcast %cst_13 : f32 to vector<1x256xf32>
    %32 = arith.mulf %31, %28 : vector<1x256xf32>
    %cst_14 = arith.constant 12.566371 : f32
    %33 = vector.broadcast %cst_14 : f32 to vector<1x256xf32>
    %34 = arith.mulf %33, %28 : vector<1x256xf32>
    %cst_15 = arith.constant 25.1327419 : f32
    %35 = vector.broadcast %cst_15 : f32 to vector<1x256xf32>
    %36 = arith.mulf %35, %28 : vector<1x256xf32>
    %37 = tpu.concatenate %3, %5, %7, %9, %12, %14, %16, %18, %21, %23, %25, %27, %30, %32, %34, %36 in 0 : vector<1x256xf32>, vector<1x256xf32>, vector<1x256xf32>, vector<1x256xf32>, vector<1x256xf32>, vector<1x256xf32>, vector<1x256xf32>, vector<1x256xf32>, vector<1x256xf32>, vector<1x256xf32>, vector<1x256xf32>, vector<1x256xf32>, vector<1x256xf32>, vector<1x256xf32>, vector<1x256xf32>, vector<1x256xf32> -> vector<16x256xf32>
    %38 = math.sin %37 : vector<16x256xf32>
    %39 = math.cos %37 : vector<16x256xf32>
    %40 = tpu.concatenate %0, %38, %39 in 0 : vector<4x256xf32>, vector<16x256xf32>, vector<16x256xf32> -> vector<36x256xf32>
    %c0_16 = arith.constant 0 : index
    %c0_17 = arith.constant 0 : index
    %41 = vector.load %arg2[%c0_16, %c0_17] : memref<36x256xf32, #tpu.memory_space<vmem>>, vector<36x256xf32>
    tpu.vector_store %arg2[%c0_16, %c0_17], %40 {strides = array<i32>} : memref<36x256xf32, #tpu.memory_space<vmem>>, vector<36x256xf32>,
    return
  }
  func.func @transform_0(%arg0: i32) -> (i32, i32) {
    %c0_i32 = arith.constant 0 : i32
    %c0_i32_0 = arith.constant 0 : i32
    return %c0_i32, %arg0 : i32, i32
  }
  func.func @transform_1(%arg0: i32) -> (i32, i32) {
    %c0_i32 = arith.constant 0 : i32
    %c0_i32_0 = arith.constant 0 : i32
    return %c0_i32, %arg0 : i32, i32
  }
}

</mosaic_0001>

<llo_original>
// kernel: tpu_custom_call.1
$region0: #{tpu_custom_call.1}
  #allocation0 [shape = 'u32[]', space=smem, size = 0x4, offset = 0x4, fixed_abs, tag = 'smem constant byte address 0x4 - core index']
  #allocation1 [shape = 'u32[144,128]{1,0:T(1,128)}', space=vmem, size = 0x12000, scoped, tag = 'internal scratch']
  %s0 = inlined_call_operand.hbm [shape: f32[4,256], index: 0, kind: input, shape index: {}]
  %s1 = inlined_call_operand.hbm [shape: f32[36,256], index: 1, kind: output, shape index: {}]
  %s2 = sld [smem:[#allocation0]]
  $region18: #{tpu_custom_call.1} parent=0
    _
  %s4 = ssub.s32 1, %s2
  %s5 = scalar_select 0, %s4, %s2
  $region1: #{tpu_custom_call.1} parent=0
    #allocation2 [shape = 'u8[4096]{0}', space=vmem, size = 0x1000, scoped, tag = 'input window, operand 0, single buffered']
    #allocation3 [shape = 's32[1]{0}', space=sflag, size = 0x4, scoped, tag = 'scoped memory for tpu_custom_call.1']
    #allocation4 [shape = 's32[1]{0}', space=sflag, size = 0x4, scoped, tag = 'scoped memory for tpu_custom_call.1']
    #allocation5 [shape = 'u8[40960]{0}', space=vmem, size = 0xa000, scoped, tag = 'output window, operand 0, single buffered']
    %6 = vsyncpa [#allocation3], 0
    %7 = vsyncpa [#allocation4], 0
    // Predicated region
    $region2: #{tpu_custom_call.1} parent=1 // pred_check
      _
    $region3: #{tpu_custom_call.1} parent=1 // pred_check_branch
      %9 = sbr.rel (0) target = $region5
    $region4: #{tpu_custom_call.1} parent=1 // pred_region
      %s11 = ssub.s32 128, 128
      %12 = vsyncadd [#allocation3], %s11
      %s14 = sshll.u32 [#allocation2], 4
      %s15 = int_to_ptr.vmem [resolvable:$true] %s14
      %17 = dma.hbm_to_vmem [thread:$0]  %s0, 128, %s15, [#allocation3]
    $region5: #{tpu_custom_call.1} parent=1 // pred_fallthru
      _
    // Predicated region
    $region6: #{tpu_custom_call.1} parent=1 // pred_check
      _
    $region7: #{tpu_custom_call.1} parent=1 // pred_check_branch
      %19 = sbr.rel (0) target = $region9
    $region8: #{tpu_custom_call.1} parent=1 // pred_region
      %20 = dma.done [#allocation3], 128
    $region9: #{tpu_custom_call.1} parent=1 // pred_fallthru
      _
    %v21 = vld [vmem:[#allocation2] sm:$0xff]
    %v22 = vmul.f32 %v21, 3.1415927
    %v23 = vmul.f32 %v21, 6.2831855
    %v24 = vmul.f32 %v21, 12.566371
    %v25 = vmul.f32 %v21, 25.132742
    %v27 = vlaneseq
    %v28 = vshrl.u32 %v27, 7
    %v29 = vsub.s32 0, %v28
    %v30 = vrot.slane %v22, %v29
    %v31 = vlaneseq
    %v32 = vshrl.u32 %v31, 7
    %v33 = vsub.s32 4, %v32
    %v34 = vrot.slane %v22, %v33
    %v38 = vlaneseq
    %v39 = vshrl.u32 %v38, 7
    %v40 = vsub.s32 0, %v39
    %v41 = vrot.slane %v23, %v40
    %v42 = vlaneseq
    %v43 = vshrl.u32 %v42, 7
    %v44 = vsub.s32 4, %v43
    %v45 = vrot.slane %v23, %v44
    %v49 = vlaneseq
    %v50 = vshrl.u32 %v49, 7
    %v51 = vsub.s32 0, %v50
    %v52 = vrot.slane %v24, %v51
    %v53 = vlaneseq
    %v54 = vshrl.u32 %v53, 7
    %v55 = vsub.s32 4, %v54
    %v56 = vrot.slane %v24, %v55
    %v60 = vlaneseq
    %v61 = vshrl.u32 %v60, 7
    %v62 = vsub.s32 0, %v61
    %v63 = vrot.slane %v25, %v62
    %v64 = vlaneseq
    %v65 = vshrl.u32 %v64, 7
    %v66 = vsub.s32 4, %v65
    %v67 = vrot.slane %v25, %v66
    %v70 = vlaneseq
    %v71 = vshrl.u32 %v70, 7
    %v72 = vsub.s32 1, %v71
    %v73 = vrot.slane %v22, %v72
    %v74 = vlaneseq
    %v75 = vshrl.u32 %v74, 7
    %v76 = vsub.s32 5, %v75
    %v77 = vrot.slane %v22, %v76
    %v80 = vlaneseq
    %v81 = vshrl.u32 %v80, 7
    %v82 = vsub.s32 1, %v81
    %v83 = vrot.slane %v23, %v82
    %v84 = vlaneseq
    %v85 = vshrl.u32 %v84, 7
    %v86 = vsub.s32 5, %v85
    %v87 = vrot.slane %v23, %v86
    %v90 = vlaneseq
    %v91 = vshrl.u32 %v90, 7
    %v92 = vsub.s32 1, %v91
    %v93 = vrot.slane %v24, %v92
    %v94 = vlaneseq
    %v95 = vshrl.u32 %v94, 7
    %v96 = vsub.s32 5, %v95
    %v97 = vrot.slane %v24, %v96
    %v100 = vlaneseq
    %v101 = vshrl.u32 %v100, 7
    %v102 = vsub.s32 1, %v101
    %v103 = vrot.slane %v25, %v102
    %v104 = vlaneseq
    %v105 = vshrl.u32 %v104, 7
    %v106 = vsub.s32 5, %v105
    %v107 = vrot.slane %v25, %v106
    %v110 = vlaneseq
    %v111 = vshrl.u32 %v110, 7
    %v112 = vsub.s32 2, %v111
    %v113 = vrot.slane %v22, %v112
    %v114 = vlaneseq
    %v115 = vshrl.u32 %v114, 7
    %v116 = vsub.s32 6, %v115
    %v117 = vrot.slane %v22, %v116
    %v120 = vlaneseq
    %v121 = vshrl.u32 %v120, 7
    %v122 = vsub.s32 2, %v121
    %v123 = vrot.slane %v23, %v122
    %v124 = vlaneseq
    %v125 = vshrl.u32 %v124, 7
    %v126 = vsub.s32 6, %v125
    %v127 = vrot.slane %v23, %v126
    %v130 = vlaneseq
    %v131 = vshrl.u32 %v130, 7
    %v132 = vsub.s32 2, %v131
    %v133 = vrot.slane %v24, %v132
    %v134 = vlaneseq
    %v135 = vshrl.u32 %v134, 7
    %v136 = vsub.s32 6, %v135
    %v137 = vrot.slane %v24, %v136
    %v140 = vlaneseq
    %v141 = vshrl.u32 %v140, 7
    %v142 = vsub.s32 2, %v141
    %v143 = vrot.slane %v25, %v142
    %v144 = vlaneseq
    %v145 = vshrl.u32 %v144, 7
    %v146 = vsub.s32 6, %v145
    %v147 = vrot.slane %v25, %v146
    %v150 = vlaneseq
    %v151 = vshrl.u32 %v150, 7
    %v152 = vsub.s32 3, %v151
    %v153 = vrot.slane %v22, %v152
    %v154 = vlaneseq
    %v155 = vshrl.u32 %v154, 7
    %v156 = vsub.s32 7, %v155
    %v157 = vrot.slane %v22, %v156
    %v160 = vlaneseq
    %v161 = vshrl.u32 %v160, 7
    %v162 = vsub.s32 3, %v161
    %v163 = vrot.slane %v23, %v162
    %v164 = vlaneseq
    %v165 = vshrl.u32 %v164, 7
    %v166 = vsub.s32 7, %v165
    %v167 = vrot.slane %v23, %v166
    %v170 = vlaneseq
    %v171 = vshrl.u32 %v170, 7
    %v172 = vsub.s32 3, %v171
    %v173 = vrot.slane %v24, %v172
    %v174 = vlaneseq
    %v175 = vshrl.u32 %v174, 7
    %v176 = vsub.s32 7, %v175
    %v177 = vrot.slane %v24, %v176
    %v180 = vlaneseq
    %v181 = vshrl.u32 %v180, 7
    %v182 = vsub.s32 3, %v181
    %v183 = vrot.slane %v25, %v182
    %v184 = vlaneseq
    %v185 = vshrl.u32 %v184, 7
    %v186 = vsub.s32 7, %v185
    %v187 = vrot.slane %v25, %v186
    %vm190 = vcmask 1040384
    %v191 = vsel %vm190, %v30, %v41
    %v192 = vsel %vm190, %v34, %v45
    %vm193 = vcmask 1041408
    %v194 = vsel %vm193, %v191, %v52
    %v195 = vsel %vm193, %v192, %v56
    %vm196 = vcmask 1042432
    %v197 = vsel %vm196, %v194, %v63
    %v198 = vsel %vm196, %v195, %v67
    %vm199 = vcmask 1043456
    %v200 = vsel %vm199, %v197, %v73
    %v201 = vsel %vm199, %v198, %v77
    %vm202 = vcmask 1044480
    %v203 = vsel %vm202, %v200, %v83
    %v204 = vsel %vm202, %v201, %v87
    %vm205 = vcmask 1045504
    %v206 = vsel %vm205, %v203, %v93
    %v207 = vsel %vm205, %v204, %v97
    %vm208 = vcmask 1046528
    %v209 = vsel %vm208, %v206, %v103
    %v210 = vsel %vm208, %v207, %v107
    %v211 = vsel %vm190, %v113, %v123
    %v212 = vsel %vm190, %v117, %v127
    %v213 = vsel %vm193, %v211, %v133
    %v214 = vsel %vm193, %v212, %v137
    %v215 = vsel %vm196, %v213, %v143
    %v216 = vsel %vm196, %v214, %v147
    %v217 = vsel %vm199, %v215, %v153
    %v218 = vsel %vm199, %v216, %v157
    %v219 = vsel %vm202, %v217, %v163
    %v220 = vsel %vm202, %v218, %v167
    %v221 = vsel %vm205, %v219, %v173
    %v222 = vsel %vm205, %v220, %v177
    %v223 = vsel %vm208, %v221, %v183
    %v224 = vsel %vm208, %v222, %v187
    %v225 = vand.u32 2147483647, %v209
    %vm226 = vcmp.le.f32.partialorder %v225, 0.7853982
    %vm227 = vcmp.lt.s32.totalorder %v209, 0
    %v228 = vand.u32 %v209, 2139095040
    %v229 = vshrl.u32 %v228, 23
    %v230 = vsub.s32 %v229, 127
    %v231 = vand.u32 2147483647, %v209
    %v232 = vand.u32 %v231, 8388607
    %v233 = vor.u32 %v232, 8388608
    %v234 = vsub.s32 0, %v233
    %v235 = vadd.s32 %v230, 1
    %vm236 = vcmp.gt.s32.totalorder %v235, 0
    %v237 = vsel %vm236, %v235, 0
    %v238 = vshrl.u32 %v237, 5
    %v239 = vand.u32 %v237, 31
    %v240 = vsub.s32 32, %v239
    %v241 = vshrl.u32 683565275, %v240
    %v242 = vshll.u32 683565275, %v239
    %v243 = vshrl.u32 2475754826, %v240
    %v244 = vor.u32 %v242, %v243
    %v245 = vshll.u32 2475754826, %v239
    %v246 = vshrl.u32 2131351028, %v240
    %v247 = vor.u32 %v245, %v246
    %v248 = vshll.u32 2131351028, %v239
    %v249 = vshrl.u32 2102212464, %v240
    %v250 = vor.u32 %v248, %v249
    %v251 = vshll.u32 2102212464, %v239
    %v252 = vshrl.u32 920167782, %v240
    %v253 = vor.u32 %v251, %v252
    %v254 = vshll.u32 920167782, %v239
    %v255 = vshrl.u32 1326507024, %v240
    %v256 = vor.u32 %v254, %v255
    %vm257 = vcmp.lt.s32.totalorder %v238, 1
    %vm258 = vcmp.lt.s32.totalorder %v238, 2
    %vm259 = vcmp.lt.s32.totalorder %v238, 3
    %vm260 = vcmp.lt.s32.totalorder %v238, 4
    %v261 = vsel %vm257, %v241, %v244
    %v262 = vsel %vm260, %v250, 2102212464
    %v263 = vsel %vm259, %v247, %v262
    %v264 = vsel %vm258, %v261, %v263
    %v265 = vsel %vm257, %v244, %v247
    %v266 = vsel %vm260, %v253, 920167782
    %v267 = vsel %vm259, %v250, %v266
    %v268 = vsel %vm258, %v265, %v267
    %v269 = vsel %vm257, %v247, %v250
    %v270 = vsel %vm260, %v256, 1326507024
    %v271 = vsel %vm259, %v253, %v270
    %v272 = vsel %vm258, %v269, %v271
    %v273 = vshll.u32 %v233, 8
    %v274 = vmul.u32.u64.compose %v273, %v272
    %v275 = vextract.low.u32 %v274
    %v276 = vextract.high.u32 %v274
    %v277 = vmul.u32.u64.compose %v273, %v268
    %v278 = vextract.low.u32 %v277
    %v279 = vextract.high.u32 %v277
    %v280 = vmul.u32 %v273, %v264
    %v281 = vadd.s32 %v276, %v278
    %vm282 = vc.u32 %v276, %v278
    %v283 = vadd.s32 %v279, 1
    %v284 = vsel %vm282, %v283, %v279
    %v285 = vadd.s32 %v280, %v284
    %v286 = vadd.s32 %v285, 536870912
    %v287 = vshrl.u32 %v286, 30
    %v288 = vshll.u32 %v287, 30
    %v289 = vsub.s32 %v285, %v288
    %vm290 = vcmp.lt.s32.totalorder %v289, 0
    %v291 = vsub.s32 0, %v289
    %v292 = vsel %vm290, %v291, %v289
    %v293 = vclz %v292
    %v294 = vsub.s32 %v293, 2
    %vm295 = vcmp.gt.s32.totalorder 0, %v294
    %v296 = vsel %vm295, 0, %v294
    %v297 = vsub.s32 32, %v296
    %v298 = vshll.u32 %v289, %v296
    %v299 = vshrl.u32 %v281, %v297
    %v300 = vor.u32 %v298, %v299
    %v301 = vsub.s32 4294967266, %v296
    %v302 = vadd.s32 %v301, 127
    %v303 = vshll.u32 %v302, 23
    %v304 = vor.u32 4788187, %v303
    %v305 = vand.u32 2147483647, %v304
    %v307 = vcvt.s32.f32 %v300
    %v308 = vmul.f32 %v307, %v305
    %v309 = vxor.u32 %v308, 2147483648
    %v310 = vsel %vm227, %v309, %v308
    %v311 = vsub.s32 4, %v287
    %v312 = vsel %vm227, %v311, %v287
    %v313 = vsel %vm226, %v209, %v310
    %v314 = vsel %vm226, 0, %v312
    %v315 = vcosq.f32.pop %v313
    %v316 = vsinq.f32.pop %v313
    %vm317 = vweird.f32 %v209
    %v318 = vadd.s32 %v314, 3
    %v319 = vand.u32 %v318, 3
    %vm320 = vcmp.lt.s32.totalorder %v319, 2
    %vm321 = vcmp.eq.s32.totalorder %v319, 0
    %v322 = vxor.u32 %v316, 2147483648
    %v323 = vsel %vm321, %v315, %v322
    %vm324 = vcmp.eq.s32.totalorder %v319, 2
    %v325 = vxor.u32 %v315, 2147483648
    %v326 = vsel %vm324, %v325, %v316
    %v327 = vsel %vm320, %v323, %v326
    %v328 = vsel %vm317, nan, %v327
    %v329 = vand.u32 2147483647, %v210
    %vm330 = vcmp.le.f32.partialorder %v329, 0.7853982
    %vm331 = vcmp.lt.s32.totalorder %v210, 0
    %v332 = vand.u32 %v210, 2139095040
    %v333 = vshrl.u32 %v332, 23
    %v334 = vsub.s32 %v333, 127
    %v335 = vand.u32 2147483647, %v210
    %v336 = vand.u32 %v335, 8388607
    %v337 = vor.u32 %v336, 8388608
    %v338 = vsub.s32 0, %v337
    %v339 = vadd.s32 %v334, 1
    %vm340 = vcmp.gt.s32.totalorder %v339, 0
    %v341 = vsel %vm340, %v339, 0
    %v342 = vshrl.u32 %v341, 5
    %v343 = vand.u32 %v341, 31
    %v344 = vsub.s32 32, %v343
    %v345 = vshrl.u32 683565275, %v344
    %v346 = vshll.u32 683565275, %v343
    %v347 = vshrl.u32 2475754826, %v344
    %v348 = vor.u32 %v346, %v347
    %v349 = vshll.u32 2475754826, %v343
    %v350 = vshrl.u32 2131351028, %v344
    %v351 = vor.u32 %v349, %v350
    %v352 = vshll.u32 2131351028, %v343
    %v353 = vshrl.u32 2102212464, %v344
    %v354 = vor.u32 %v352, %v353
    %v355 = vshll.u32 2102212464, %v343
    %v356 = vshrl.u32 920167782, %v344
    %v357 = vor.u32 %v355, %v356
    %v358 = vshll.u32 920167782, %v343
    %v359 = vshrl.u32 1326507024, %v344
    %v360 = vor.u32 %v358, %v359
    %vm361 = vcmp.lt.s32.totalorder %v342, 1
    %vm362 = vcmp.lt.s32.totalorder %v342, 2
    %vm363 = vcmp.lt.s32.totalorder %v342, 3
    %vm364 = vcmp.lt.s32.totalorder %v342, 4
    %v365 = vsel %vm361, %v345, %v348
    %v366 = vsel %vm364, %v354, 2102212464
    %v367 = vsel %vm363, %v351, %v366
    %v368 = vsel %vm362, %v365, %v367
    %v369 = vsel %vm361, %v348, %v351
    %v370 = vsel %vm364, %v357, 920167782
    %v371 = vsel %vm363, %v354, %v370
    %v372 = vsel %vm362, %v369, %v371
    %v373 = vsel %vm361, %v351, %v354
    %v374 = vsel %vm364, %v360, 1326507024
    %v375 = vsel %vm363, %v357, %v374
    %v376 = vsel %vm362, %v373, %v375
    %v377 = vshll.u32 %v337, 8
    %v378 = vmul.u32.u64.compose %v377, %v376
    %v379 = vextract.low.u32 %v378
    %v380 = vextract.high.u32 %v378
    %v381 = vmul.u32.u64.compose %v377, %v372
    %v382 = vextract.low.u32 %v381
    %v383 = vextract.high.u32 %v381
    %v384 = vmul.u32 %v377, %v368
    %v385 = vadd.s32 %v380, %v382
    %vm386 = vc.u32 %v380, %v382
    %v387 = vadd.s32 %v383, 1
    %v388 = vsel %vm386, %v387, %v383
    %v389 = vadd.s32 %v384, %v388
    %v390 = vadd.s32 %v389, 536870912
    %v391 = vshrl.u32 %v390, 30
    %v392 = vshll.u32 %v391, 30
    %v393 = vsub.s32 %v389, %v392
    %vm394 = vcmp.lt.s32.totalorder %v393, 0
    %v395 = vsub.s32 0, %v393
    %v396 = vsel %vm394, %v395, %v393
    %v397 = vclz %v396
    %v398 = vsub.s32 %v397, 2
    %vm399 = vcmp.gt.s32.totalorder 0, %v398
    %v400 = vsel %vm399, 0, %v398
    %v401 = vsub.s32 32, %v400
    %v402 = vshll.u32 %v393, %v400
    %v403 = vshrl.u32 %v385, %v401
    %v404 = vor.u32 %v402, %v403
    %v405 = vsub.s32 4294967266, %v400
    %v406 = vadd.s32 %v405, 127
    %v407 = vshll.u32 %v406, 23
    %v408 = vor.u32 4788187, %v407
    %v409 = vand.u32 2147483647, %v408
    %v411 = vcvt.s32.f32 %v404
    %v412 = vmul.f32 %v411, %v409
    %v413 = vxor.u32 %v412, 2147483648
    %v414 = vsel %vm331, %v413, %v412
    %v415 = vsub.s32 4, %v391
    %v416 = vsel %vm331, %v415, %v391
    %v417 = vsel %vm330, %v210, %v414
    %v418 = vsel %vm330, 0, %v416
    %v419 = vcosq.f32.pop %v417
    %v420 = vsinq.f32.pop %v417
    %vm421 = vweird.f32 %v210
    %v422 = vadd.s32 %v418, 3
    %v423 = vand.u32 %v422, 3
    %vm424 = vcmp.lt.s32.totalorder %v423, 2
    %vm425 = vcmp.eq.s32.totalorder %v423, 0
    %v426 = vxor.u32 %v420, 2147483648
    %v427 = vsel %vm425, %v419, %v426
    %vm428 = vcmp.eq.s32.totalorder %v423, 2
    %v429 = vxor.u32 %v419, 2147483648
    %v430 = vsel %vm428, %v429, %v420
    %v431 = vsel %vm424, %v427, %v430
    %v432 = vsel %vm421, nan, %v431
    %v433 = vand.u32 2147483647, %v223
    %vm434 = vcmp.le.f32.partialorder %v433, 0.7853982
    %vm435 = vcmp.lt.s32.totalorder %v223, 0
    %v436 = vand.u32 %v223, 2139095040
    %v437 = vshrl.u32 %v436, 23
    %v438 = vsub.s32 %v437, 127
    %v439 = vand.u32 2147483647, %v223
    %v440 = vand.u32 %v439, 8388607
    %v441 = vor.u32 %v440, 8388608
    %v442 = vsub.s32 0, %v441
    %v443 = vadd.s32 %v438, 1
    %vm444 = vcmp.gt.s32.totalorder %v443, 0
    %v445 = vsel %vm444, %v443, 0
    %v446 = vshrl.u32 %v445, 5
    %v447 = vand.u32 %v445, 31
    %v448 = vsub.s32 32, %v447
    %v449 = vshrl.u32 683565275, %v448
    %v450 = vshll.u32 683565275, %v447
    %v451 = vshrl.u32 2475754826, %v448
    %v452 = vor.u32 %v450, %v451
    %v453 = vshll.u32 2475754826, %v447
    %v454 = vshrl.u32 2131351028, %v448
    %v455 = vor.u32 %v453, %v454
    %v456 = vshll.u32 2131351028, %v447
    %v457 = vshrl.u32 2102212464, %v448
    %v458 = vor.u32 %v456, %v457
    %v459 = vshll.u32 2102212464, %v447
    %v460 = vshrl.u32 920167782, %v448
    %v461 = vor.u32 %v459, %v460
    %v462 = vshll.u32 920167782, %v447
    %v463 = vshrl.u32 1326507024, %v448
    %v464 = vor.u32 %v462, %v463
    %vm465 = vcmp.lt.s32.totalorder %v446, 1
    %vm466 = vcmp.lt.s32.totalorder %v446, 2
    %vm467 = vcmp.lt.s32.totalorder %v446, 3
    %vm468 = vcmp.lt.s32.totalorder %v446, 4
    %v469 = vsel %vm465, %v449, %v452
    %v470 = vsel %vm468, %v458, 2102212464
    %v471 = vsel %vm467, %v455, %v470
    %v472 = vsel %vm466, %v469, %v471
    %v473 = vsel %vm465, %v452, %v455
    %v474 = vsel %vm468, %v461, 920167782
    %v475 = vsel %vm467, %v458, %v474
    %v476 = vsel %vm466, %v473, %v475
    %v477 = vsel %vm465, %v455, %v458
    %v478 = vsel %vm468, %v464, 1326507024
    %v479 = vsel %vm467, %v461, %v478
    %v480 = vsel %vm466, %v477, %v479
    %v481 = vshll.u32 %v441, 8
    %v482 = vmul.u32.u64.compose %v481, %v480
    %v483 = vextract.low.u32 %v482
    %v484 = vextract.high.u32 %v482
    %v485 = vmul.u32.u64.compose %v481, %v476
    %v486 = vextract.low.u32 %v485
    %v487 = vextract.high.u32 %v485
    %v488 = vmul.u32 %v481, %v472
    %v489 = vadd.s32 %v484, %v486
    %vm490 = vc.u32 %v484, %v486
    %v491 = vadd.s32 %v487, 1
    %v492 = vsel %vm490, %v491, %v487
    %v493 = vadd.s32 %v488, %v492
    %v494 = vadd.s32 %v493, 536870912
    %v495 = vshrl.u32 %v494, 30
    %v496 = vshll.u32 %v495, 30
    %v497 = vsub.s32 %v493, %v496
    %vm498 = vcmp.lt.s32.totalorder %v497, 0
    %v499 = vsub.s32 0, %v497
    %v500 = vsel %vm498, %v499, %v497
    %v501 = vclz %v500
    %v502 = vsub.s32 %v501, 2
    %vm503 = vcmp.gt.s32.totalorder 0, %v502
    %v504 = vsel %vm503, 0, %v502
    %v505 = vsub.s32 32, %v504
    %v506 = vshll.u32 %v497, %v504
    %v507 = vshrl.u32 %v489, %v505
    %v508 = vor.u32 %v506, %v507
    %v509 = vsub.s32 4294967266, %v504
    %v510 = vadd.s32 %v509, 127
    %v511 = vshll.u32 %v510, 23
    %v512 = vor.u32 4788187, %v511
    %v513 = vand.u32 2147483647, %v512
    %v515 = vcvt.s32.f32 %v508
    %v516 = vmul.f32 %v515, %v513
    %v517 = vxor.u32 %v516, 2147483648
    %v518 = vsel %vm435, %v517, %v516
    %v519 = vsub.s32 4, %v495
    %v520 = vsel %vm435, %v519, %v495
    %v521 = vsel %vm434, %v223, %v518
    %v522 = vsel %vm434, 0, %v520
    %v523 = vcosq.f32.pop %v521
    %v524 = vsinq.f32.pop %v521
    %vm525 = vweird.f32 %v223
    %v526 = vadd.s32 %v522, 3
    %v527 = vand.u32 %v526, 3
    %vm528 = vcmp.lt.s32.totalorder %v527, 2
    %vm529 = vcmp.eq.s32.totalorder %v527, 0
    %v530 = vxor.u32 %v524, 2147483648
    %v531 = vsel %vm529, %v523, %v530
    %vm532 = vcmp.eq.s32.totalorder %v527, 2
    %v533 = vxor.u32 %v523, 2147483648
    %v534 = vsel %vm532, %v533, %v524
    %v535 = vsel %vm528, %v531, %v534
    %v536 = vsel %vm525, nan, %v535
    %v537 = vand.u32 2147483647, %v224
    %vm538 = vcmp.le.f32.partialorder %v537, 0.7853982
    %vm539 = vcmp.lt.s32.totalorder %v224, 0
    %v540 = vand.u32 %v224, 2139095040
    %v541 = vshrl.u32 %v540, 23
    %v542 = vsub.s32 %v541, 127
    %v543 = vand.u32 2147483647, %v224
    %v544 = vand.u32 %v543, 8388607
    %v545 = vor.u32 %v544, 8388608
    %v546 = vsub.s32 0, %v545
    %v547 = vadd.s32 %v542, 1
    %vm548 = vcmp.gt.s32.totalorder %v547, 0
    %v549 = vsel %vm548, %v547, 0
    %v550 = vshrl.u32 %v549, 5
    %v551 = vand.u32 %v549, 31
    %v552 = vsub.s32 32, %v551
    %v553 = vshrl.u32 683565275, %v552
    %v554 = vshll.u32 683565275, %v551
    %v555 = vshrl.u32 2475754826, %v552
    %v556 = vor.u32 %v554, %v555
    %v557 = vshll.u32 2475754826, %v551
    %v558 = vshrl.u32 2131351028, %v552
    %v559 = vor.u32 %v557, %v558
    %v560 = vshll.u32 2131351028, %v551
    %v561 = vshrl.u32 2102212464, %v552
    %v562 = vor.u32 %v560, %v561
    %v563 = vshll.u32 2102212464, %v551
    %v564 = vshrl.u32 920167782, %v552
    %v565 = vor.u32 %v563, %v564
    %v566 = vshll.u32 920167782, %v551
    %v567 = vshrl.u32 1326507024, %v552
    %v568 = vor.u32 %v566, %v567
    %vm569 = vcmp.lt.s32.totalorder %v550, 1
    %vm570 = vcmp.lt.s32.totalorder %v550, 2
    %vm571 = vcmp.lt.s32.totalorder %v550, 3
    %vm572 = vcmp.lt.s32.totalorder %v550, 4
    %v573 = vsel %vm569, %v553, %v556
    %v574 = vsel %vm572, %v562, 2102212464
    %v575 = vsel %vm571, %v559, %v574
    %v576 = vsel %vm570, %v573, %v575
    %v577 = vsel %vm569, %v556, %v559
    %v578 = vsel %vm572, %v565, 920167782
    %v579 = vsel %vm571, %v562, %v578
    %v580 = vsel %vm570, %v577, %v579
    %v581 = vsel %vm569, %v559, %v562
    %v582 = vsel %vm572, %v568, 1326507024
    %v583 = vsel %vm571, %v565, %v582
    %v584 = vsel %vm570, %v581, %v583
    %v585 = vshll.u32 %v545, 8
    %v586 = vmul.u32.u64.compose %v585, %v584
    %v587 = vextract.low.u32 %v586
    %v588 = vextract.high.u32 %v586
    %v589 = vmul.u32.u64.compose %v585, %v580
    %v590 = vextract.low.u32 %v589
    %v591 = vextract.high.u32 %v589
    %v592 = vmul.u32 %v585, %v576
    %v593 = vadd.s32 %v588, %v590
    %vm594 = vc.u32 %v588, %v590
    %v595 = vadd.s32 %v591, 1
    %v596 = vsel %vm594, %v595, %v591
    %v597 = vadd.s32 %v592, %v596
    %v598 = vadd.s32 %v597, 536870912
    %v599 = vshrl.u32 %v598, 30
    %v600 = vshll.u32 %v599, 30
    %v601 = vsub.s32 %v597, %v600
    %vm602 = vcmp.lt.s32.totalorder %v601, 0
    %v603 = vsub.s32 0, %v601
    %v604 = vsel %vm602, %v603, %v601
    %v605 = vclz %v604
    %v606 = vsub.s32 %v605, 2
    %vm607 = vcmp.gt.s32.totalorder 0, %v606
    %v608 = vsel %vm607, 0, %v606
    %v609 = vsub.s32 32, %v608
    %v610 = vshll.u32 %v601, %v608
    %v611 = vshrl.u32 %v593, %v609
    %v612 = vor.u32 %v610, %v611
    %v613 = vsub.s32 4294967266, %v608
    %v614 = vadd.s32 %v613, 127
    %v615 = vshll.u32 %v614, 23
    %v616 = vor.u32 4788187, %v615
    %v617 = vand.u32 2147483647, %v616
    %v619 = vcvt.s32.f32 %v612
    %v620 = vmul.f32 %v619, %v617
    %v621 = vxor.u32 %v620, 2147483648
    %v622 = vsel %vm539, %v621, %v620
    %v623 = vsub.s32 4, %v599
    %v624 = vsel %vm539, %v623, %v599
    %v625 = vsel %vm538, %v224, %v622
    %v626 = vsel %vm538, 0, %v624
    %v627 = vcosq.f32.pop %v625
    %v628 = vsinq.f32.pop %v625
    %vm629 = vweird.f32 %v224
    %v630 = vadd.s32 %v626, 3
    %v631 = vand.u32 %v630, 3
    %vm632 = vcmp.lt.s32.totalorder %v631, 2
    %vm633 = vcmp.eq.s32.totalorder %v631, 0
    %v634 = vxor.u32 %v628, 2147483648
    %v635 = vsel %vm633, %v627, %v634
    %vm636 = vcmp.eq.s32.totalorder %v631, 2
    %v637 = vxor.u32 %v627, 2147483648
    %v638 = vsel %vm636, %v637, %v628
    %v639 = vsel %vm632, %v635, %v638
    %v640 = vsel %vm629, nan, %v639
    %v641 = vand.u32 2147483647, %v209
    %vm642 = vcmp.le.f32.partialorder %v641, 0.7853982
    %vm643 = vcmp.lt.s32.totalorder %v209, 0
    %v644 = vand.u32 %v209, 2139095040
    %v645 = vshrl.u32 %v644, 23
    %v646 = vsub.s32 %v645, 127
    %v647 = vand.u32 2147483647, %v209
    %v648 = vand.u32 %v647, 8388607
    %v649 = vor.u32 %v648, 8388608
    %v650 = vsub.s32 0, %v649
    %v651 = vadd.s32 %v646, 1
    %vm652 = vcmp.gt.s32.totalorder %v651, 0
    %v653 = vsel %vm652, %v651, 0
    %v654 = vshrl.u32 %v653, 5
    %v655 = vand.u32 %v653, 31
    %v656 = vsub.s32 32, %v655
    %v657 = vshrl.u32 683565275, %v656
    %v658 = vshll.u32 683565275, %v655
    %v659 = vshrl.u32 2475754826, %v656
    %v660 = vor.u32 %v658, %v659
    %v661 = vshll.u32 2475754826, %v655
    %v662 = vshrl.u32 2131351028, %v656
    %v663 = vor.u32 %v661, %v662
    %v664 = vshll.u32 2131351028, %v655
    %v665 = vshrl.u32 2102212464, %v656
    %v666 = vor.u32 %v664, %v665
    %v667 = vshll.u32 2102212464, %v655
    %v668 = vshrl.u32 920167782, %v656
    %v669 = vor.u32 %v667, %v668
    %v670 = vshll.u32 920167782, %v655
    %v671 = vshrl.u32 1326507024, %v656
    %v672 = vor.u32 %v670, %v671
    %vm673 = vcmp.lt.s32.totalorder %v654, 1
    %vm674 = vcmp.lt.s32.totalorder %v654, 2
    %vm675 = vcmp.lt.s32.totalorder %v654, 3
    %vm676 = vcmp.lt.s32.totalorder %v654, 4
    %v677 = vsel %vm673, %v657, %v660
    %v678 = vsel %vm676, %v666, 2102212464
    %v679 = vsel %vm675, %v663, %v678
    %v680 = vsel %vm674, %v677, %v679
    %v681 = vsel %vm673, %v660, %v663
    %v682 = vsel %vm676, %v669, 920167782
    %v683 = vsel %vm675, %v666, %v682
    %v684 = vsel %vm674, %v681, %v683
    %v685 = vsel %vm673, %v663, %v666
    %v686 = vsel %vm676, %v672, 1326507024
    %v687 = vsel %vm675, %v669, %v686
    %v688 = vsel %vm674, %v685, %v687
    %v689 = vshll.u32 %v649, 8
    %v690 = vmul.u32.u64.compose %v689, %v688
    %v691 = vextract.low.u32 %v690
    %v692 = vextract.high.u32 %v690
    %v693 = vmul.u32.u64.compose %v689, %v684
    %v694 = vextract.low.u32 %v693
    %v695 = vextract.high.u32 %v693
    %v696 = vmul.u32 %v689, %v680
    %v697 = vadd.s32 %v692, %v694
    %vm698 = vc.u32 %v692, %v694
    %v699 = vadd.s32 %v695, 1
    %v700 = vsel %vm698, %v699, %v695
    %v701 = vadd.s32 %v696, %v700
    %v702 = vadd.s32 %v701, 536870912
    %v703 = vshrl.u32 %v702, 30
    %v704 = vshll.u32 %v703, 30
    %v705 = vsub.s32 %v701, %v704
    %vm706 = vcmp.lt.s32.totalorder %v705, 0
    %v707 = vsub.s32 0, %v705
    %v708 = vsel %vm706, %v707, %v705
    %v709 = vclz %v708
    %v710 = vsub.s32 %v709, 2
    %vm711 = vcmp.gt.s32.totalorder 0, %v710
    %v712 = vsel %vm711, 0, %v710
    %v713 = vsub.s32 32, %v712
    %v714 = vshll.u32 %v705, %v712
    %v715 = vshrl.u32 %v697, %v713
    %v716 = vor.u32 %v714, %v715
    %v717 = vsub.s32 4294967266, %v712
    %v718 = vadd.s32 %v717, 127
    %v719 = vshll.u32 %v718, 23
    %v720 = vor.u32 4788187, %v719
    %v721 = vand.u32 2147483647, %v720
    %v723 = vcvt.s32.f32 %v716
    %v724 = vmul.f32 %v723, %v721
    %v725 = vxor.u32 %v724, 2147483648
    %v726 = vsel %vm643, %v725, %v724
    %v727 = vsub.s32 4, %v703
    %v728 = vsel %vm643, %v727, %v703
    %v729 = vsel %vm642, %v209, %v726
    %v730 = vsel %vm642, 0, %v728
    %v731 = vcosq.f32.pop %v729
    %v732 = vsinq.f32.pop %v729
    %vm733 = vweird.f32 %v209
    %v734 = vand.u32 %v730, 3
    %vm735 = vcmp.lt.s32.totalorder %v734, 2
    %vm736 = vcmp.eq.s32.totalorder %v734, 0
    %v737 = vxor.u32 %v732, 2147483648
    %v738 = vsel %vm736, %v731, %v737
    %vm739 = vcmp.eq.s32.totalorder %v734, 2
    %v740 = vxor.u32 %v731, 2147483648
    %v741 = vsel %vm739, %v740, %v732
    %v742 = vsel %vm735, %v738, %v741
    %v743 = vsel %vm733, nan, %v742
    %v744 = vand.u32 2147483647, %v210
    %vm745 = vcmp.le.f32.partialorder %v744, 0.7853982
    %vm746 = vcmp.lt.s32.totalorder %v210, 0
    %v747 = vand.u32 %v210, 2139095040
    %v748 = vshrl.u32 %v747, 23
    %v749 = vsub.s32 %v748, 127
    %v750 = vand.u32 2147483647, %v210
    %v751 = vand.u32 %v750, 8388607
    %v752 = vor.u32 %v751, 8388608
    %v753 = vsub.s32 0, %v752
    %v754 = vadd.s32 %v749, 1
    %vm755 = vcmp.gt.s32.totalorder %v754, 0
    %v756 = vsel %vm755, %v754, 0
    %v757 = vshrl.u32 %v756, 5
    %v758 = vand.u32 %v756, 31
    %v759 = vsub.s32 32, %v758
    %v760 = vshrl.u32 683565275, %v759
    %v761 = vshll.u32 683565275, %v758
    %v762 = vshrl.u32 2475754826, %v759
    %v763 = vor.u32 %v761, %v762
    %v764 = vshll.u32 2475754826, %v758
    %v765 = vshrl.u32 2131351028, %v759
    %v766 = vor.u32 %v764, %v765
    %v767 = vshll.u32 2131351028, %v758
    %v768 = vshrl.u32 2102212464, %v759
    %v769 = vor.u32 %v767, %v768
    %v770 = vshll.u32 2102212464, %v758
    %v771 = vshrl.u32 920167782, %v759
    %v772 = vor.u32 %v770, %v771
    %v773 = vshll.u32 920167782, %v758
    %v774 = vshrl.u32 1326507024, %v759
    %v775 = vor.u32 %v773, %v774
    %vm776 = vcmp.lt.s32.totalorder %v757, 1
    %vm777 = vcmp.lt.s32.totalorder %v757, 2
    %vm778 = vcmp.lt.s32.totalorder %v757, 3
    %vm779 = vcmp.lt.s32.totalorder %v757, 4
    %v780 = vsel %vm776, %v760, %v763
    %v781 = vsel %vm779, %v769, 2102212464
    %v782 = vsel %vm778, %v766, %v781
    %v783 = vsel %vm777, %v780, %v782
    %v784 = vsel %vm776, %v763, %v766
    %v785 = vsel %vm779, %v772, 920167782
    %v786 = vsel %vm778, %v769, %v785
    %v787 = vsel %vm777, %v784, %v786
    %v788 = vsel %vm776, %v766, %v769
    %v789 = vsel %vm779, %v775, 1326507024
    %v790 = vsel %vm778, %v772, %v789
    %v791 = vsel %vm777, %v788, %v790
    %v792 = vshll.u32 %v752, 8
    %v793 = vmul.u32.u64.compose %v792, %v791
    %v794 = vextract.low.u32 %v793
    %v795 = vextract.high.u32 %v793
    %v796 = vmul.u32.u64.compose %v792, %v787
    %v797 = vextract.low.u32 %v796
    %v798 = vextract.high.u32 %v796
    %v799 = vmul.u32 %v792, %v783
    %v800 = vadd.s32 %v795, %v797
    %vm801 = vc.u32 %v795, %v797
    %v802 = vadd.s32 %v798, 1
    %v803 = vsel %vm801, %v802, %v798
    %v804 = vadd.s32 %v799, %v803
    %v805 = vadd.s32 %v804, 536870912
    %v806 = vshrl.u32 %v805, 30
    %v807 = vshll.u32 %v806, 30
    %v808 = vsub.s32 %v804, %v807
    %vm809 = vcmp.lt.s32.totalorder %v808, 0
    %v810 = vsub.s32 0, %v808
    %v811 = vsel %vm809, %v810, %v808
    %v812 = vclz %v811
    %v813 = vsub.s32 %v812, 2
    %vm814 = vcmp.gt.s32.totalorder 0, %v813
    %v815 = vsel %vm814, 0, %v813
    %v816 = vsub.s32 32, %v815
    %v817 = vshll.u32 %v808, %v815
    %v818 = vshrl.u32 %v800, %v816
    %v819 = vor.u32 %v817, %v818
    %v820 = vsub.s32 4294967266, %v815
    %v821 = vadd.s32 %v820, 127
    %v822 = vshll.u32 %v821, 23
    %v823 = vor.u32 4788187, %v822
    %v824 = vand.u32 2147483647, %v823
    %v826 = vcvt.s32.f32 %v819
    %v827 = vmul.f32 %v826, %v824
    %v828 = vxor.u32 %v827, 2147483648
    %v829 = vsel %vm746, %v828, %v827
    %v830 = vsub.s32 4, %v806
    %v831 = vsel %vm746, %v830, %v806
    %v832 = vsel %vm745, %v210, %v829
    %v833 = vsel %vm745, 0, %v831
    %v834 = vcosq.f32.pop %v832
    %v835 = vsinq.f32.pop %v832
    %vm836 = vweird.f32 %v210
    %v837 = vand.u32 %v833, 3
    %vm838 = vcmp.lt.s32.totalorder %v837, 2
    %vm839 = vcmp.eq.s32.totalorder %v837, 0
    %v840 = vxor.u32 %v835, 2147483648
    %v841 = vsel %vm839, %v834, %v840
    %vm842 = vcmp.eq.s32.totalorder %v837, 2
    %v843 = vxor.u32 %v834, 2147483648
    %v844 = vsel %vm842, %v843, %v835
    %v845 = vsel %vm838, %v841, %v844
    %v846 = vsel %vm836, nan, %v845
    %v847 = vand.u32 2147483647, %v223
    %vm848 = vcmp.le.f32.partialorder %v847, 0.7853982
    %vm849 = vcmp.lt.s32.totalorder %v223, 0
    %v850 = vand.u32 %v223, 2139095040
    %v851 = vshrl.u32 %v850, 23
    %v852 = vsub.s32 %v851, 127
    %v853 = vand.u32 2147483647, %v223
    %v854 = vand.u32 %v853, 8388607
    %v855 = vor.u32 %v854, 8388608
    %v856 = vsub.s32 0, %v855
    %v857 = vadd.s32 %v852, 1
    %vm858 = vcmp.gt.s32.totalorder %v857, 0
    %v859 = vsel %vm858, %v857, 0
    %v860 = vshrl.u32 %v859, 5
    %v861 = vand.u32 %v859, 31
    %v862 = vsub.s32 32, %v861
    %v863 = vshrl.u32 683565275, %v862
    %v864 = vshll.u32 683565275, %v861
    %v865 = vshrl.u32 2475754826, %v862
    %v866 = vor.u32 %v864, %v865
    %v867 = vshll.u32 2475754826, %v861
    %v868 = vshrl.u32 2131351028, %v862
    %v869 = vor.u32 %v867, %v868
    %v870 = vshll.u32 2131351028, %v861
    %v871 = vshrl.u32 2102212464, %v862
    %v872 = vor.u32 %v870, %v871
    %v873 = vshll.u32 2102212464, %v861
    %v874 = vshrl.u32 920167782, %v862
    %v875 = vor.u32 %v873, %v874
    %v876 = vshll.u32 920167782, %v861
    %v877 = vshrl.u32 1326507024, %v862
    %v878 = vor.u32 %v876, %v877
    %vm879 = vcmp.lt.s32.totalorder %v860, 1
    %vm880 = vcmp.lt.s32.totalorder %v860, 2
    %vm881 = vcmp.lt.s32.totalorder %v860, 3
    %vm882 = vcmp.lt.s32.totalorder %v860, 4
    %v883 = vsel %vm879, %v863, %v866
    %v884 = vsel %vm882, %v872, 2102212464
    %v885 = vsel %vm881, %v869, %v884
    %v886 = vsel %vm880, %v883, %v885
    %v887 = vsel %vm879, %v866, %v869
    %v888 = vsel %vm882, %v875, 920167782
    %v889 = vsel %vm881, %v872, %v888
    %v890 = vsel %vm880, %v887, %v889
    %v891 = vsel %vm879, %v869, %v872
    %v892 = vsel %vm882, %v878, 1326507024
    %v893 = vsel %vm881, %v875, %v892
    %v894 = vsel %vm880, %v891, %v893
    %v895 = vshll.u32 %v855, 8
    %v896 = vmul.u32.u64.compose %v895, %v894
    %v897 = vextract.low.u32 %v896
    %v898 = vextract.high.u32 %v896
    %v899 = vmul.u32.u64.compose %v895, %v890
    %v900 = vextract.low.u32 %v899
    %v901 = vextract.high.u32 %v899
    %v902 = vmul.u32 %v895, %v886
    %v903 = vadd.s32 %v898, %v900
    %vm904 = vc.u32 %v898, %v900
    %v905 = vadd.s32 %v901, 1
    %v906 = vsel %vm904, %v905, %v901
    %v907 = vadd.s32 %v902, %v906
    %v908 = vadd.s32 %v907, 536870912
    %v909 = vshrl.u32 %v908, 30
    %v910 = vshll.u32 %v909, 30
    %v911 = vsub.s32 %v907, %v910
    %vm912 = vcmp.lt.s32.totalorder %v911, 0
    %v913 = vsub.s32 0, %v911
    %v914 = vsel %vm912, %v913, %v911
    %v915 = vclz %v914
    %v916 = vsub.s32 %v915, 2
    %vm917 = vcmp.gt.s32.totalorder 0, %v916
    %v918 = vsel %vm917, 0, %v916
    %v919 = vsub.s32 32, %v918
    %v920 = vshll.u32 %v911, %v918
    %v921 = vshrl.u32 %v903, %v919
    %v922 = vor.u32 %v920, %v921
    %v923 = vsub.s32 4294967266, %v918
    %v924 = vadd.s32 %v923, 127
    %v925 = vshll.u32 %v924, 23
    %v926 = vor.u32 4788187, %v925
    %v927 = vand.u32 2147483647, %v926
    %v929 = vcvt.s32.f32 %v922
    %v930 = vmul.f32 %v929, %v927
    %v931 = vxor.u32 %v930, 2147483648
    %v932 = vsel %vm849, %v931, %v930
    %v933 = vsub.s32 4, %v909
    %v934 = vsel %vm849, %v933, %v909
    %v935 = vsel %vm848, %v223, %v932
    %v936 = vsel %vm848, 0, %v934
    %v937 = vcosq.f32.pop %v935
    %v938 = vsinq.f32.pop %v935
    %vm939 = vweird.f32 %v223
    %v940 = vand.u32 %v936, 3
    %vm941 = vcmp.lt.s32.totalorder %v940, 2
    %vm942 = vcmp.eq.s32.totalorder %v940, 0
    %v943 = vxor.u32 %v938, 2147483648
    %v944 = vsel %vm942, %v937, %v943
    %vm945 = vcmp.eq.s32.totalorder %v940, 2
    %v946 = vxor.u32 %v937, 2147483648
    %v947 = vsel %vm945, %v946, %v938
    %v948 = vsel %vm941, %v944, %v947
    %v949 = vsel %vm939, nan, %v948
    %v950 = vand.u32 2147483647, %v224
    %vm951 = vcmp.le.f32.partialorder %v950, 0.7853982
    %vm952 = vcmp.lt.s32.totalorder %v224, 0
    %v953 = vand.u32 %v224, 2139095040
    %v954 = vshrl.u32 %v953, 23
    %v955 = vsub.s32 %v954, 127
    %v956 = vand.u32 2147483647, %v224
    %v957 = vand.u32 %v956, 8388607
    %v958 = vor.u32 %v957, 8388608
    %v959 = vsub.s32 0, %v958
    %v960 = vadd.s32 %v955, 1
    %vm961 = vcmp.gt.s32.totalorder %v960, 0
    %v962 = vsel %vm961, %v960, 0
    %v963 = vshrl.u32 %v962, 5
    %v964 = vand.u32 %v962, 31
    %v965 = vsub.s32 32, %v964
    %v966 = vshrl.u32 683565275, %v965
    %v967 = vshll.u32 683565275, %v964
    %v968 = vshrl.u32 2475754826, %v965
    %v969 = vor.u32 %v967, %v968
    %v970 = vshll.u32 2475754826, %v964
    %v971 = vshrl.u32 2131351028, %v965
    %v972 = vor.u32 %v970, %v971
    %v973 = vshll.u32 2131351028, %v964
    %v974 = vshrl.u32 2102212464, %v965
    %v975 = vor.u32 %v973, %v974
    %v976 = vshll.u32 2102212464, %v964
    %v977 = vshrl.u32 920167782, %v965
    %v978 = vor.u32 %v976, %v977
    %v979 = vshll.u32 920167782, %v964
    %v980 = vshrl.u32 1326507024, %v965
    %v981 = vor.u32 %v979, %v980
    %vm982 = vcmp.lt.s32.totalorder %v963, 1
    %vm983 = vcmp.lt.s32.totalorder %v963, 2
    %vm984 = vcmp.lt.s32.totalorder %v963, 3
    %vm985 = vcmp.lt.s32.totalorder %v963, 4
    %v986 = vsel %vm982, %v966, %v969
    %v987 = vsel %vm985, %v975, 2102212464
    %v988 = vsel %vm984, %v972, %v987
    %v989 = vsel %vm983, %v986, %v988
    %v990 = vsel %vm982, %v969, %v972
    %v991 = vsel %vm985, %v978, 920167782
    %v992 = vsel %vm984, %v975, %v991
    %v993 = vsel %vm983, %v990, %v992
    %v994 = vsel %vm982, %v972, %v975
    %v995 = vsel %vm985, %v981, 1326507024
    %v996 = vsel %vm984, %v978, %v995
    %v997 = vsel %vm983, %v994, %v996
    %v998 = vshll.u32 %v958, 8
    %v999 = vmul.u32.u64.compose %v998, %v997
    %v1000 = vextract.low.u32 %v999
    %v1001 = vextract.high.u32 %v999
    %v1002 = vmul.u32.u64.compose %v998, %v993
    %v1003 = vextract.low.u32 %v1002
    %v1004 = vextract.high.u32 %v1002
    %v1005 = vmul.u32 %v998, %v989
    %v1006 = vadd.s32 %v1001, %v1003
    %vm1007 = vc.u32 %v1001, %v1003
    %v1008 = vadd.s32 %v1004, 1
    %v1009 = vsel %vm1007, %v1008, %v1004
    %v1010 = vadd.s32 %v1005, %v1009
    %v1011 = vadd.s32 %v1010, 536870912
    %v1012 = vshrl.u32 %v1011, 30
    %v1013 = vshll.u32 %v1012, 30
    %v1014 = vsub.s32 %v1010, %v1013
    %vm1015 = vcmp.lt.s32.totalorder %v1014, 0
    %v1016 = vsub.s32 0, %v1014
    %v1017 = vsel %vm1015, %v1016, %v1014
    %v1018 = vclz %v1017
    %v1019 = vsub.s32 %v1018, 2
    %vm1020 = vcmp.gt.s32.totalorder 0, %v1019
    %v1021 = vsel %vm1020, 0, %v1019
    %v1022 = vsub.s32 32, %v1021
    %v1023 = vshll.u32 %v1014, %v1021
    %v1024 = vshrl.u32 %v1006, %v1022
    %v1025 = vor.u32 %v1023, %v1024
    %v1026 = vsub.s32 4294967266, %v1021
    %v1027 = vadd.s32 %v1026, 127
    %v1028 = vshll.u32 %v1027, 23
    %v1029 = vor.u32 4788187, %v1028
    %v1030 = vand.u32 2147483647, %v1029
    %v1032 = vcvt.s32.f32 %v1025
    %v1033 = vmul.f32 %v1032, %v1030
    %v1034 = vxor.u32 %v1033, 2147483648
    %v1035 = vsel %vm952, %v1034, %v1033
    %v1036 = vsub.s32 4, %v1012
    %v1037 = vsel %vm952, %v1036, %v1012
    %v1038 = vsel %vm951, %v224, %v1035
    %v1039 = vsel %vm951, 0, %v1037
    %v1040 = vcosq.f32.pop %v1038
    %v1041 = vsinq.f32.pop %v1038
    %vm1042 = vweird.f32 %v224
    %v1043 = vand.u32 %v1039, 3
    %vm1044 = vcmp.lt.s32.totalorder %v1043, 2
    %vm1045 = vcmp.eq.s32.totalorder %v1043, 0
    %v1046 = vxor.u32 %v1041, 2147483648
    %v1047 = vsel %vm1045, %v1040, %v1046
    %vm1048 = vcmp.eq.s32.totalorder %v1043, 2
    %v1049 = vxor.u32 %v1040, 2147483648
    %v1050 = vsel %vm1048, %v1049, %v1041
    %v1051 = vsel %vm1044, %v1047, %v1050
    %v1052 = vsel %vm1042, nan, %v1051
    %v1054 = vcombine.high %v21, %v21
    %v1060 = vrot.slane %v328, 4
    %v1061 = vrot.slane %v432, 4
    %v1062 = vrot.slane %v536, 4
    %v1063 = vsel %vm199, %v1060, %v1062
    %v1064 = vrot.slane %v640, 4
    %v1065 = vsel %vm199, %v1061, %v1064
    %v1076 = vrot.slane %v743, 4
    %v1077 = vrot.slane %v846, 4
    %v1078 = vrot.slane %v949, 4
    %v1079 = vsel %vm199, %v1076, %v1078
    %v1080 = vrot.slane %v1052, 4
    %v1081 = vsel %vm199, %v1077, %v1080
    %v1088 = vsel %vm199, %v21, %v1060
    %v1089 = vsel %vm199, %v1054, %v1061
    %v1090 = vsel %vm199, %v1062, %v1076
    %v1091 = vsel %vm199, %v1064, %v1077
    %1092 = vst [vmem:[#allocation5] sm:$0xff] %v1088
    %1093 = vst [vmem:[#allocation5 + $0x8] sm:$0xff] %v1089
    %1094 = vst [vmem:[#allocation5 + $0x10] sm:$0xff] %v1063
    %1095 = vst [vmem:[#allocation5 + $0x18] sm:$0xff] %v1065
    %1096 = vst [vmem:[#allocation5 + $0x20] sm:$0xff] %v1090
    %1097 = vst [vmem:[#allocation5 + $0x28] sm:$0xff] %v1091
    %1098 = vst [vmem:[#allocation5 + $0x30] sm:$0xff] %v1079
    %1099 = vst [vmem:[#allocation5 + $0x38] sm:$0xff] %v1081
    %1100 = vst [vmem:[#allocation5 + $0x40] sm:$0xf] %v1078
    %1101 = vst [vmem:[#allocation5 + $0x48] sm:$0xf] %v1080
    // Predicated region
    $region10: #{tpu_custom_call.1} parent=1 // pred_check
      _
    $region11: #{tpu_custom_call.1} parent=1 // pred_check_branch
      %1103 = sbr.rel (0) target = $region13
    $region12: #{tpu_custom_call.1} parent=1 // pred_region
      %s1105 = ssub.s32 1280, 1280
      %1106 = vsyncadd [#allocation4], %s1105
      %s1107 = sshll.u32 [#allocation5], 4
      %s1108 = int_to_ptr.vmem [resolvable:$true] %s1107
      %1113 = dma.vmem_to_hbm [thread:$0]  %s1108, 1280, %s1, [#allocation4], 256, 256, 16
    $region13: #{tpu_custom_call.1} parent=1 // pred_fallthru
      _
    // Predicated region
    $region14: #{tpu_custom_call.1} parent=1 // pred_check
      _
    $region15: #{tpu_custom_call.1} parent=1 // pred_check_branch
      %1115 = sbr.rel (0) target = $region17
    $region16: #{tpu_custom_call.1} parent=1 // pred_region
      %1116 = dma.done [#allocation4], 1280
    $region17: #{tpu_custom_call.1} parent=1 // pred_fallthru
      _
    %1117 = vsyncpa [#allocation3], 1
    %1118 = vsyncpa [#allocation4], 1

</llo_original>
